<compile_context>
chip_gen: v7x
topology: tpu7x:2x2x1
jax: 0.10.0
libtpu: 0.0.40
codegen_flags: <defaults>
</compile_context>

<pallas_src>
import functools

import jax
import jax.numpy as jnp
from jax.experimental import pallas as pl
from jax.experimental.pallas import tpu as pltpu

LN_EPS = 1e-5  # torch.nn.LayerNorm default


def _round_up(x, m):
    return ((x + m - 1) // m) * m


def _ln_film_fn_tail(x_ref, mask_ref, text_ref, w_fn_ref, b_fn_ref, out_ref,
                     gamma_mod, beta_mod, gate_mod):
    """Shared tail: LayerNorm -> FiLM select -> fn (Linear) -> gated select.

    gamma_mod / beta_mod / gate_mod are f32, broadcastable to (tn, dim): the
    modality-token coefficients (gamma already includes the +1, gate is
    already sigmoid(...)).
    """
    x = x_ref[0].astype(jnp.float32)                     # (tn, dim)
    mask = mask_ref[0] != 0                              # (tn, 1) bool
    dim = x.shape[-1]
    inv_dim = 1.0 / dim

    # LayerNorm stats from raw x: two independent cross-lane reductions.
    s1 = jnp.sum(x, axis=-1, keepdims=True)
    s2 = jnp.sum(x * x, axis=-1, keepdims=True)
    mean = s1 * inv_dim
    var = jnp.maximum(s2 * inv_dim - mean * mean, 0.0)
    rstd = jax.lax.rsqrt(var + LN_EPS)

    text = text_ref[...]                                 # (2, dim) f32
    text_gamma = text[0:1]                               # layernorm_gamma + 1
    text_scale = text[1:2]                               # layerscale + 1

    # Single-select FiLM, folded with the LN normalization:
    #   (x - mean) * rstd * eff_gamma + eff_beta == x * a + c
    eff_gamma = jnp.where(mask, gamma_mod, text_gamma)   # (tn, dim)
    eff_beta = jnp.where(mask, beta_mod, 0.0)
    a = rstd * eff_gamma
    c = eff_beta - mean * a
    x2 = x * a + c

    # Inner fn: Linear(dim, dim) on the MXU (bf16 in, f32 accumulate).
    out = jnp.dot(x2.astype(jnp.bfloat16), w_fn_ref[...],
                  preferred_element_type=jnp.float32) + b_fn_ref[...]

    # ada-ln-zero gating / layerscale (single select).
    eff_scale = jnp.where(mask, gate_mod, text_scale)
    out_ref[0] = (out * eff_scale).astype(out_ref.dtype)


def _adaptive_kernel_batch_cond(x_ref, mask_ref, coeff_ref, text_ref,
                                w_fn_ref, b_fn_ref, out_ref):
    """cond is per-batch; its projection was hoisted into XLA."""
    c = coeff_ref[0].astype(jnp.float32)                 # (3, dim)
    _ln_film_fn_tail(x_ref, mask_ref, text_ref, w_fn_ref, b_fn_ref, out_ref,
                     gamma_mod=c[0:1], beta_mod=c[1:2], gate_mod=c[2:3])


def _adaptive_kernel_token_cond(x_ref, mask_ref, cond_ref, text_ref,
                                w_cond_ref, b_cond_ref, w_fn_ref, b_fn_ref,
                                out_ref, *, dim):
    """cond is per-token; fused FiLM + ada projection done on the MXU here."""
    proj = jnp.dot(cond_ref[0], w_cond_ref[...],
                   preferred_element_type=jnp.float32) + b_cond_ref[...]
    _ln_film_fn_tail(x_ref, mask_ref, text_ref, w_fn_ref, b_fn_ref, out_ref,
                     gamma_mod=proj[:, :dim] + 1.0,
                     beta_mod=proj[:, dim:2 * dim],
                     gate_mod=jax.nn.sigmoid(proj[:, 2 * dim:]))


def adaptive_wrapper_forward(x, cond, is_any_modality, packed_params, *,
                             target_block_bytes=1 << 20):
    """x: (b, n, dim); cond: (b, dim_cond) or (b, n, dim_cond);
    is_any_modality: (b, n) bool; packed_params from pack_params().
    Returns a bf16 (b, n, dim) array."""
    b, n, dim = x.shape
    cond_per_token = cond.ndim == 3
    dim_cond = cond.shape[-1]
    ln_gamma, layerscale, w_cond, b_cond, w_fn, b_fn = packed_params

    # ---- sequence tile: ~target_block_bytes of bf16 x per block ----
    tn = _round_up(max(target_block_bytes // (2 * dim), 1), 128)
    tn = max(256, min(tn, 2048))
    if tn >= n:
        tn = n                                  # one block spans the sequence
    if b * pl.cdiv(n, tn) < 2 and n >= 64:      # >=2 grid steps for v7x's 2 TCs
        tn = max(32, _round_up(pl.cdiv(n, 2), 32))
    grid = (b, pl.cdiv(n, tn))

    xf = x.astype(jnp.bfloat16)
    maskf = is_any_modality.astype(jnp.int8).reshape(b, n, 1)
    text_coeffs = jnp.concatenate([ln_gamma + 1.0, layerscale + 1.0], axis=0)

    tok_spec = lambda last: pl.BlockSpec((1, tn, last),
                                         lambda bi, ti: (bi, ti, 0))
    full_spec = lambda shape: pl.BlockSpec(shape,
                                           lambda bi, ti: (0,) * len(shape))

    if cond_per_token:
        condf = cond.astype(jnp.bfloat16)
        kernel = functools.partial(_adaptive_kernel_token_cond, dim=dim)
        in_specs = [tok_spec(dim), tok_spec(1), tok_spec(dim_cond),
                    full_spec((2, dim)),
                    full_spec((dim_cond, 3 * dim)), full_spec((1, 3 * dim)),
                    full_spec((dim, dim)), full_spec((1, dim))]
        args = (xf, maskf, condf, text_coeffs,
                w_cond.astype(jnp.bfloat16), b_cond, w_fn, b_fn)
        flops = 2 * b * n * dim * dim + 2 * b * n * dim_cond * 3 * dim
        transcendentals = b * n * (dim + 1)
        bytes_accessed = (2 * b * n * dim * 2 + b * n * dim_cond * 2 + b * n
                          + dim_cond * 3 * dim * 2 + dim * dim * 2)
    else:
        # Hoist the per-batch cond projection (only b rows) out of the kernel;
        # do it in f32 for the additive beta term's precision.
        proj = cond.astype(jnp.float32) @ w_cond + b_cond        # (b, 3*dim)
        gamma, beta, ada = jnp.split(proj, 3, axis=-1)
        coeffs = jnp.stack([gamma + 1.0, beta, jax.nn.sigmoid(ada)], axis=1)
        kernel = _adaptive_kernel_batch_cond
        in_specs = [tok_spec(dim), tok_spec(1),
                    pl.BlockSpec((1, 3, dim), lambda bi, ti: (bi, 0, 0)),
                    full_spec((2, dim)),
                    full_spec((dim, dim)), full_spec((1, dim))]
        args = (xf, maskf, coeffs, text_coeffs, w_fn, b_fn)
        flops = 2 * b * n * dim * dim
        transcendentals = b * n
        bytes_accessed = (2 * b * n * dim * 2 + b * n + b * 3 * dim * 4
                          + dim * dim * 2)

    # ---- VMEM budget: double-buffered streamed tiles + resident weights ----
    lane = 128
    dpad = _round_up(dim, lane)
    dcpad = _round_up(dim_cond, lane)
    tnp8 = _round_up(tn, 8)
    stream = tnp8 * dpad * 2 * 2 + tnp8 * lane               # x + out (bf16) + mask
    weights = dim * dpad * 2 + 16 * dpad * 4                 # w_fn + small vectors
    if cond_per_token:
        stream += tnp8 * dcpad * 2
        weights += dcpad * 3 * dpad * 2 + 8 * 3 * dpad * 4
    temps = 10 * tnp8 * dpad * 4                             # in-flight f32 temps
    need = 2 * (stream + weights) + temps + (2 << 20)
    try:
        vmem_cap = int(pltpu.get_tpu_info().vmem_capacity_bytes)
    except Exception:
        vmem_cap = 64 << 20                                  # conservative (v7x)
    vmem_bytes = int(min(max(need, 32 << 20), (vmem_cap * 4) // 5))

    cost = pl.CostEstimate(flops=int(flops),
                           transcendentals=int(transcendentals),
                           bytes_accessed=int(bytes_accessed))

    return pl.pallas_call(
        kernel,
        out_shape=jax.ShapeDtypeStruct((b, n, dim), jnp.bfloat16),
        grid=grid,
        in_specs=in_specs,
        out_specs=tok_spec(dim),
        compiler_params=pltpu.CompilerParams(
            dimension_semantics=("parallel", "parallel"),
            vmem_limit_bytes=vmem_bytes),
        cost_estimate=cost,
    )(*args)


def make_params(key, dim, dim_cond, ada_ln_zero_init_bias=-2.0):
    """PyTorch-module-style params (f32).  Shapes follow AdaptiveWrapper.__init__;
    values are small random numbers (instead of the module's zero init) so the
    whole compute path is exercised and testable."""
    ks = jax.random.split(key, 7)
    ln_gamma = 0.1 * jax.random.normal(ks[0], (1, dim), jnp.float32)
    layerscale = 0.1 * jax.random.normal(ks[1], (1, dim), jnp.float32)
    w_film = 0.1 * jax.random.normal(ks[2], (dim_cond, 2 * dim), jnp.float32)
    b_film = 0.05 * jax.random.normal(ks[3], (1, 2 * dim), jnp.float32)
    w_ada = 0.1 * jax.random.normal(ks[4], (dim_cond, dim), jnp.float32)
    b_ada = jnp.full((1, dim), ada_ln_zero_init_bias, jnp.float32)
    w_fn = 0.1 * jax.random.normal(ks[5], (dim, dim), jnp.float32)
    b_fn = 0.1 * jax.random.normal(ks[6], (1, dim), jnp.float32)
    return (ln_gamma, layerscale, w_film, b_film, w_ada, b_ada, w_fn, b_fn)


def pack_params(params):
    """Fuse to_film + to_ada_ln_zero into one (dim_cond, 3*dim) projection.
    w_cond stays f32 (the hoisted per-batch projection runs in f32; the
    per-token path casts it to bf16 once per call for the in-kernel matmul)."""
    (ln_gamma, layerscale, w_film, b_film, w_ada, b_ada, w_fn, b_fn) = params
    w_cond = jnp.concatenate([w_film, w_ada], axis=-1)
    b_cond = jnp.concatenate([b_film, b_ada], axis=-1)
    return (ln_gamma, layerscale, w_cond, b_cond,
            w_fn.astype(jnp.bfloat16), b_fn)


def reference_forward(x, cond, is_any_modality, params):
    """Pure-JAX f32 reference mirroring the PyTorch forward exactly."""
    (ln_gamma, layerscale, w_film, b_film, w_ada, b_ada, w_fn, b_fn) = params
    if cond.ndim == 2:
        cond = cond[:, None, :]
    mask = is_any_modality[..., None]
    mean = jnp.mean(x, axis=-1, keepdims=True)
    var = jnp.mean((x - mean) ** 2, axis=-1, keepdims=True)
    xn = (x - mean) / jnp.sqrt(var + LN_EPS)
    film = cond @ w_film + b_film
    gamma, beta = jnp.split(film, 2, axis=-1)
    text_tokens = xn * (ln_gamma + 1.0)
    modality_tokens = xn * (gamma + 1.0) + beta
    xm = jnp.where(mask, modality_tokens, text_tokens)
    out = xm @ w_fn.astype(jnp.float32) + b_fn
    text_out = out * (layerscale + 1.0)
    modalities_out = out * jax.nn.sigmoid(cond @ w_ada + b_ada)
    return jnp.where(mask, modalities_out, text_out)


if __name__ == "__main__":
    b, n, dim, dim_cond = 2, 8, 128, 64

    key = jax.random.PRNGKey(0)
    kx, kc, kx2, kc2, km, km2, kp = jax.random.split(key, 7)

    params = make_params(kp, dim, dim_cond)
    packed = pack_params(params)

    # --- path 1: per-batch cond (b, dim_cond), single full-sequence block ---
    x = jax.random.normal(kx, (b, n, dim), jnp.float32)
    cond = jax.random.normal(kc, (b, dim_cond), jnp.float32)
    is_any_modality = jax.random.bernoulli(km, 0.5, (b, n))

    out = adaptive_wrapper_forward(x, cond, is_any_modality, packed)
    out = jax.block_until_ready(out).astype(jnp.float32)
    ref = reference_forward(x, cond, is_any_modality, params)
    assert out.shape == (b, n, dim)
    assert jnp.allclose(out, ref, atol=7.5e-2, rtol=7.5e-2), (
        "2-D cond mismatch, max|err|=%g" % float(jnp.max(jnp.abs(out - ref))))

    # --- path 2: per-token cond, b=1 (exercises the dual-TC sequence split
    #     and the partial tail block: n2=72 -> tn=64 + partial 8-row tail) ---
    b2, n2 = 1, 72
    x2 = jax.random.normal(kx2, (b2, n2, dim), jnp.float32)
    cond2 = jax.random.normal(kc2, (b2, n2, dim_cond), jnp.float32)
    mask2 = jax.random.bernoulli(km2, 0.5, (b2, n2))
    out2 = adaptive_wrapper_forward(x2, cond2, mask2, packed)
    out2 = jax.block_until_ready(out2).astype(jnp.float32)
    ref2 = reference_forward(x2, cond2, mask2, params)
    assert out2.shape == (b2, n2, dim)
    assert jnp.allclose(out2, ref2, atol=7.5e-2, rtol=7.5e-2), (
        "3-D cond mismatch, max|err|=%g" % float(jnp.max(jnp.abs(out2 - ref2))))

    print("KERNEL_OK")
</pallas_src>

<mosaic_0001>
module attributes {stable_mosaic.version = 11 : i64} {
  func.func @_adaptive_kernel_batch_cond(%arg0: i32, %arg1: i32, %arg2: memref<1x8x128xbf16, #tpu.memory_space<vmem>>, %arg3: memref<1x8x1xi8, #tpu.memory_space<vmem>>, %arg4: memref<1x3x128xf32, #tpu.memory_space<vmem>>, %arg5: memref<2x128xf32, #tpu.memory_space<vmem>>, %arg6: memref<128x128xbf16, #tpu.memory_space<vmem>>, %arg7: memref<1x128xf32, #tpu.memory_space<vmem>>, %arg8: memref<1x8x128xbf16, #tpu.memory_space<vmem>>) attributes {dimension_semantics = [#tpu.dimension_semantics<parallel>, #tpu.dimension_semantics<parallel>], iteration_bounds = array<i64: 2, 1>, scalar_prefetch = 0 : i64, scratch_operands = 0 : i64, tpu.core_type = #tpu.core_type<tc>, window_params = [{transform_indices = @transform_0, window_bounds = array<i64: 1, 8, 128>}, {transform_indices = @transform_1, window_bounds = array<i64: 1, 8, 1>}, {transform_indices = @transform_2, window_bounds = array<i64: 1, 3, 128>}, {pipeline_mode = #tpu.pipeline_mode<synchronous>, transform_indices = @transform_3, window_bounds = array<i64: 2, 128>}, {pipeline_mode = #tpu.pipeline_mode<synchronous>, transform_indices = @transform_4, window_bounds = array<i64: 128, 128>}, {pipeline_mode = #tpu.pipeline_mode<synchronous>, transform_indices = @transform_5, window_bounds = array<i64: 1, 128>}, {transform_indices = @transform_6, window_bounds = array<i64: 1, 8, 128>}]} {
    %c0 = arith.constant 0 : index
    %c0_0 = arith.constant 0 : index
    %c0_1 = arith.constant 0 : index
    %0 = vector.load %arg4[%c0, %c0_0, %c0_1] : memref<1x3x128xf32, #tpu.memory_space<vmem>>, vector<1x3x128xf32>
    %1 = vector.shape_cast %0 : vector<1x3x128xf32> to vector<3x128xf32>
    %2 = vector.extract_strided_slice %1 {offsets = [0, 0], sizes = [1, 128], strides = [1, 1]} : vector<3x128xf32> to vector<1x128xf32>
    %3 = vector.extract_strided_slice %1 {offsets = [1, 0], sizes = [1, 128], strides = [1, 1]} : vector<3x128xf32> to vector<1x128xf32>
    %4 = vector.extract_strided_slice %1 {offsets = [2, 0], sizes = [1, 128], strides = [1, 1]} : vector<3x128xf32> to vector<1x128xf32>
    %c0_2 = arith.constant 0 : index
    %c0_3 = arith.constant 0 : index
    %c0_4 = arith.constant 0 : index
    %5 = vector.load %arg2[%c0_2, %c0_3, %c0_4] : memref<1x8x128xbf16, #tpu.memory_space<vmem>>, vector<1x8x128xbf16>
    %6 = vector.shape_cast %5 : vector<1x8x128xbf16> to vector<8x128xbf16>
    %7 = arith.extf %6 : vector<8x128xbf16> to vector<8x128xf32>
    %c0_5 = arith.constant 0 : index
    %c0_6 = arith.constant 0 : index
    %c0_7 = arith.constant 0 : index
    %8 = vector.load %arg3[%c0_5, %c0_6, %c0_7] : memref<1x8x1xi8, #tpu.memory_space<vmem>>, vector<1x8x1xi8>
    %9 = vector.shape_cast %8 : vector<1x8x1xi8> to vector<8x1xi8>
    %c0_i8 = arith.constant 0 : i8
    %10 = vector.broadcast %c0_i8 : i8 to vector<8x1xi8>
    %11 = arith.cmpi ne, %9, %10 : vector<8x1xi8>
    %cst = arith.constant dense<0.000000e+00> : vector<8xf32>
    %12 = vector.multi_reduction <add>, %7, %cst [1] : vector<8x128xf32> to vector<8xf32>
    %13 = vector.shape_cast %12 : vector<8xf32> to vector<8x1xf32>
    %14 = arith.mulf %7, %7 : vector<8x128xf32>
    %cst_8 = arith.constant dense<0.000000e+00> : vector<8xf32>
    %15 = vector.multi_reduction <add>, %14, %cst_8 [1] : vector<8x128xf32> to vector<8xf32>
    %16 = vector.shape_cast %15 : vector<8xf32> to vector<8x1xf32>
    %cst_9 = arith.constant 7.812500e-03 : f32
    %17 = vector.broadcast %cst_9 : f32 to vector<8x1xf32>
    %18 = arith.mulf %13, %17 : vector<8x1xf32>
    %cst_10 = arith.constant 7.812500e-03 : f32
    %19 = vector.broadcast %cst_10 : f32 to vector<8x1xf32>
    %20 = arith.mulf %16, %19 : vector<8x1xf32>
    %21 = arith.mulf %18, %18 : vector<8x1xf32>
    %22 = arith.subf %20, %21 : vector<8x1xf32>
    %cst_11 = arith.constant 0.000000e+00 : f32
    %23 = vector.broadcast %cst_11 : f32 to vector<8x1xf32>
    %24 = arith.maximumf %22, %23 : vector<8x1xf32>
    %cst_12 = arith.constant 9.99999974E-6 : f32
    %25 = vector.broadcast %cst_12 : f32 to vector<8x1xf32>
    %26 = arith.addf %24, %25 : vector<8x1xf32>
    %27 = math.rsqrt %26 : vector<8x1xf32>
    %c0_13 = arith.constant 0 : index
    %c0_14 = arith.constant 0 : index
    %28 = vector.load %arg5[%c0_13, %c0_14] : memref<2x128xf32, #tpu.memory_space<vmem>>, vector<2x128xf32>
    %29 = vector.extract_strided_slice %28 {offsets = [0, 0], sizes = [1, 128], strides = [1, 1]} : vector<2x128xf32> to vector<1x128xf32>
    %30 = vector.extract_strided_slice %28 {offsets = [1, 0], sizes = [1, 128], strides = [1, 1]} : vector<2x128xf32> to vector<1x128xf32>
    %31 = vector.shape_cast %11 : vector<8x1xi1> to vector<8x1xi1>
    %32 = vector.broadcast %31 : vector<8x1xi1> to vector<8x128xi1>
    %33 = vector.shape_cast %2 : vector<1x128xf32> to vector<1x128xf32>
    %34 = vector.broadcast %33 : vector<1x128xf32> to vector<8x128xf32>
    %35 = vector.shape_cast %29 : vector<1x128xf32> to vector<1x128xf32>
    %36 = vector.broadcast %35 : vector<1x128xf32> to vector<8x128xf32>
    %37 = arith.select %32, %34, %36 : vector<8x128xi1>, vector<8x128xf32>
    %cst_15 = arith.constant 0.000000e+00 : f32
    %38 = vector.shape_cast %11 : vector<8x1xi1> to vector<8x1xi1>
    %39 = vector.broadcast %38 : vector<8x1xi1> to vector<8x128xi1>
    %40 = vector.shape_cast %3 : vector<1x128xf32> to vector<1x128xf32>
    %41 = vector.broadcast %40 : vector<1x128xf32> to vector<8x128xf32>
    %42 = vector.broadcast %cst_15 : f32 to vector<8x128xf32>
    %43 = arith.select %39, %41, %42 : vector<8x128xi1>, vector<8x128xf32>
    %44 = vector.broadcast %27 : vector<8x1xf32> to vector<8x128xf32>
    %45 = arith.mulf %44, %37 : vector<8x128xf32>
    %46 = vector.broadcast %18 : vector<8x1xf32> to vector<8x128xf32>
    %47 = arith.mulf %46, %45 : vector<8x128xf32>
    %48 = arith.subf %43, %47 : vector<8x128xf32>
    %49 = arith.mulf %7, %45 : vector<8x128xf32>
    %50 = arith.addf %49, %48 : vector<8x128xf32>
    %51 = arith.truncf %50 : vector<8x128xf32> to vector<8x128xbf16>
    %c0_16 = arith.constant 0 : index
    %c0_17 = arith.constant 0 : index
    %52 = vector.load %arg6[%c0_16, %c0_17] : memref<128x128xbf16, #tpu.memory_space<vmem>>, vector<128x128xbf16>
    %cst_18 = arith.constant dense<0.000000e+00> : vector<8x128xf32>
    %53 = tpu.matmul %51, %52, %cst_18 {dimension_numbers = #tpu.dot_dimension_numbers<[1], [0], [0], [1], [0, 0, 1, 1], [], []>} : vector<8x128xbf16>, vector<128x128xbf16>, vector<8x128xf32> -> vector<8x128xf32>
    %c0_19 = arith.constant 0 : index
    %c0_20 = arith.constant 0 : index
    %54 = vector.load %arg7[%c0_19, %c0_20] : memref<1x128xf32, #tpu.memory_space<vmem>>, vector<1x128xf32>
    %55 = vector.broadcast %54 : vector<1x128xf32> to vector<8x128xf32>
    %56 = arith.addf %53, %55 : vector<8x128xf32>
    %57 = vector.shape_cast %11 : vector<8x1xi1> to vector<8x1xi1>
    %58 = vector.broadcast %57 : vector<8x1xi1> to vector<8x128xi1>
    %59 = vector.shape_cast %4 : vector<1x128xf32> to vector<1x128xf32>
    %60 = vector.broadcast %59 : vector<1x128xf32> to vector<8x128xf32>
    %61 = vector.shape_cast %30 : vector<1x128xf32> to vector<1x128xf32>
    %62 = vector.broadcast %61 : vector<1x128xf32> to vector<8x128xf32>
    %63 = arith.select %58, %60, %62 : vector<8x128xi1>, vector<8x128xf32>
    %64 = arith.mulf %56, %63 : vector<8x128xf32>
    %65 = arith.truncf %64 : vector<8x128xf32> to vector<8x128xbf16>
    %c0_21 = arith.constant 0 : index
    %c0_22 = arith.constant 0 : index
    %c0_23 = arith.constant 0 : index
    %66 = vector.load %arg8[%c0_21, %c0_22, %c0_23] : memref<1x8x128xbf16, #tpu.memory_space<vmem>>, vector<1x8x128xbf16>
    %67 = vector.shape_cast %66 : vector<1x8x128xbf16> to vector<8x128xbf16>
    %68 = vector.shape_cast %65 : vector<8x128xbf16> to vector<1x8x128xbf16>
    tpu.vector_store %arg8[%c0_21, %c0_22, %c0_23], %68 {strides = array<i32>} : memref<1x8x128xbf16, #tpu.memory_space<vmem>>, vector<1x8x128xbf16>,
    return
  }
  func.func @transform_0(%arg0: i32, %arg1: i32) -> (i32, i32, i32) {
    %c0_i32 = arith.constant 0 : i32
    %c0_i32_0 = arith.constant 0 : i32
    return %arg0, %arg1, %c0_i32 : i32, i32, i32
  }
  func.func @transform_1(%arg0: i32, %arg1: i32) -> (i32, i32, i32) {
    %c0_i32 = arith.constant 0 : i32
    %c0_i32_0 = arith.constant 0 : i32
    return %arg0, %arg1, %c0_i32 : i32, i32, i32
  }
  func.func @transform_2(%arg0: i32, %arg1: i32) -> (i32, i32, i32) {
    %c0_i32 = arith.constant 0 : i32
    %c0_i32_0 = arith.constant 0 : i32
    %c0_i32_1 = arith.constant 0 : i32
    return %arg0, %c0_i32, %c0_i32_0 : i32, i32, i32
  }
  func.func @transform_3(%arg0: i32, %arg1: i32) -> (i32, i32) {
    %c0_i32 = arith.constant 0 : i32
    %c0_i32_0 = arith.constant 0 : i32
    %c0_i32_1 = arith.constant 0 : i32
    return %c0_i32, %c0_i32_0 : i32, i32
  }
  func.func @transform_4(%arg0: i32, %arg1: i32) -> (i32, i32) {
    %c0_i32 = arith.constant 0 : i32
    %c0_i32_0 = arith.constant 0 : i32
    %c0_i32_1 = arith.constant 0 : i32
    return %c0_i32, %c0_i32_0 : i32, i32
  }
  func.func @transform_5(%arg0: i32, %arg1: i32) -> (i32, i32) {
    %c0_i32 = arith.constant 0 : i32
    %c0_i32_0 = arith.constant 0 : i32
    %c0_i32_1 = arith.constant 0 : i32
    return %c0_i32, %c0_i32_0 : i32, i32
  }
  func.func @transform_6(%arg0: i32, %arg1: i32) -> (i32, i32, i32) {
    %c0_i32 = arith.constant 0 : i32
    %c0_i32_0 = arith.constant 0 : i32
    return %arg0, %arg1, %c0_i32 : i32, i32, i32
  }
}

</mosaic_0001>

<llo_original>
// kernel: tpu_custom_call.1
$region0: #{tpu_custom_call.1}
  #allocation0 [shape = 'u32[]', space=smem, size = 0x4, offset = 0x4, fixed_abs, tag = 'smem constant byte address 0x4 - core index']
  #allocation1 [shape = 'u32[144,128]{1,0:T(1,128)}', space=vmem, size = 0x12000, scoped, tag = 'internal scratch']
  %s0 = inlined_call_operand.vmem [shape: bf16[2,8,128], index: 0, kind: input, shape index: {}]
  %s1 = inlined_call_operand.vmem [shape: s8[2,8,1], index: 1, kind: input, shape index: {}]
  %s2 = inlined_call_operand.vmem [shape: f32[2,3,128], index: 2, kind: input, shape index: {}]
  %s3 = inlined_call_operand.vmem [shape: f32[2,128], index: 3, kind: input, shape index: {}]
  %s4 = inlined_call_operand.hbm [shape: bf16[128,128], index: 4, kind: input, shape index: {}]
  %s5 = inlined_call_operand.vmem [shape: f32[1,128], index: 5, kind: input, shape index: {}]
  %s6 = inlined_call_operand.hbm [shape: bf16[2,8,128], index: 6, kind: output, shape index: {}]
  %s7 = sld [smem:[#allocation0]]
  $region61: #{tpu_custom_call.1} parent=0
    _
  %s9 = ssub.s32 1, %s7
  %s10 = scalar_select 0, %s9, %s7
  $region1: #{tpu_custom_call.1} parent=0
    #allocation2 [shape = 'u8[32768]{0}', space=vmem, size = 0x8000, scoped, tag = 'input window, operand 4, single buffered']
    #allocation3 [shape = 's32[2]{0}', space=sflag, size = 0x8, scoped, tag = 'scoped memory for tpu_custom_call.1']
    #allocation4 [shape = 's32[2]{0}', space=sflag, size = 0x8, scoped, tag = 'scoped memory for tpu_custom_call.1']
    #allocation5 [shape = 'u8[4096]{0}', space=vmem, size = 0x1000, scoped, tag = 'output window, operand 0']
    %11 = vsyncpa [#allocation3], 0
    %12 = vsyncpa [#allocation4], 0
    %s13 = scalar_lea.sflag [#allocation4], 1
    %14 = vsyncpa %s13, 0
    loop: start=0, step=1, limit=4
    $region2: #{tpu_custom_call.1} parent=1 // loop_pre_header
      _
    $region3: #{tpu_custom_call.1} parent=1 // loop_header
      %s16 = sphi 0, %s20
      %p17 = scmp.ge.s32.totalorder %s16, 4
      %s23 = sphi 0, %s35
      %s24 = sphi 0, %s31
      %s25 = sphi 0, %s23
      %s26 = sphi 0, %s24
      %s27 = sphi 0, %s25
      %s28 = sphi 0, %s26
      %s40 = sphi 0, %s42
      %s43 = sphi 0, %s40
      %s44 = sphi 0, %s43
      %s60 = sphi 0, %s44
      %s68 = sphi 0, %s70
      %s71 = sphi 0, %s68
      %s72 = sphi 0, %s71
      %s88 = sphi 0, %s72
      %s94 = sphi 0, %s96
      %s97 = sphi 0, %s94
      %s98 = sphi 0, %s97
      %s114 = sphi 0, %s98
      %s118 = sphi 0, %s118
      %s120 = sphi 0, %s118
      %s121 = sphi 0, %s120
      %s135 = sphi 0, %s121
      %s139 = sphi 0, %s139
      %s141 = sphi 0, %s139
      %s142 = sphi 0, %s141
      %s156 = sphi 0, %s142
      %s160 = sphi 0, %s160
      %s162 = sphi 0, %s160
      %s163 = sphi 0, %s162
      %s177 = sphi 0, %s163
      %s185 = sphi 0, %s187
      %s188 = sphi 0, %s185
      %s189 = sphi 0, %s188
      %s205 = sphi 0, %s189
    $region4: #{tpu_custom_call.1} parent=1 // loop_header_branch
      %19 = sbr.rel (%p17) target = $region8
    $region5: #{tpu_custom_call.1} parent=1 // loop_body
      %s21 = ssub.s32 %s16, 1
      %s22 = ssub.s32 %s16, 2
      %s29 = sadd.s32 1, %s24
      %p30 = scmp.ge.s32.totalorder %s29, 1
      %s31 = scalar_select %p30, 0, %s29
      %s32 = sadd.s32 1, %s23
      %s33 = scalar_select %p30, %s32, %s23
      %p34 = scmp.ge.s32.totalorder %s33, 2
      %s35 = scalar_select %p34, 0, %s33
      %s36 = ssub.s32 %s23, %s35
      %s37 = ssub.s32 %s24, %s31
      %s38 = sor.u32 %s36, %s37
      %p39 = scmp.eq.s32.totalorder %s38, 0
      %s41 = sadd.s32 %s40, 1
      %s42 = scalar_select %p39, %s40, %s41
      %p45 = pneg %p39
      %p46 = scmp.eq.s32.totalorder %s16, 1
      %p47 = por %p45, %p46
      %p48 = scmp.ne.s32.totalorder %s40, %s43
      %p49 = scmp.eq.s32.totalorder %s16, 0
      %p50 = por %p48, %p49
      %p51 = scmp.ne.s32.totalorder %s40, %s43
      %p52 = scmp.eq.s32.totalorder %s21, 1
      %p53 = por %p51, %p52
      %p54 = scmp.ne.s32.totalorder %s43, %s44
      %p55 = scmp.eq.s32.totalorder %s21, 0
      %p56 = por %p54, %p55
      %p57 = scmp.ne.s32.totalorder %s43, %s44
      %p58 = scmp.eq.s32.totalorder %s22, 1
      %p59 = por %p57, %p58
      %p61 = scmp.ne.s32.totalorder %s44, %s60
      %p62 = scmp.eq.s32.totalorder %s22, 0
      %p63 = por %p61, %p62
      %s64 = ssub.s32 %s23, %s35
      %s65 = ssub.s32 %s24, %s31
      %s66 = sor.u32 %s64, %s65
      %p67 = scmp.eq.s32.totalorder %s66, 0
      %s69 = sadd.s32 %s68, 1
      %s70 = scalar_select %p67, %s68, %s69
      %p73 = pneg %p67
      %p74 = scmp.eq.s32.totalorder %s16, 1
      %p75 = por %p73, %p74
      %p76 = scmp.ne.s32.totalorder %s68, %s71
      %p77 = scmp.eq.s32.totalorder %s16, 0
      %p78 = por %p76, %p77
      %p79 = scmp.ne.s32.totalorder %s68, %s71
      %p80 = scmp.eq.s32.totalorder %s21, 1
      %p81 = por %p79, %p80
      %p82 = scmp.ne.s32.totalorder %s71, %s72
      %p83 = scmp.eq.s32.totalorder %s21, 0
      %p84 = por %p82, %p83
      %p85 = scmp.ne.s32.totalorder %s71, %s72
      %p86 = scmp.eq.s32.totalorder %s22, 1
      %p87 = por %p85, %p86
      %p89 = scmp.ne.s32.totalorder %s72, %s88
      %p90 = scmp.eq.s32.totalorder %s22, 0
      %p91 = por %p89, %p90
      %s92 = ssub.s32 %s23, %s35
      %p93 = scmp.eq.s32.totalorder %s92, 0
      %s95 = sadd.s32 %s94, 1
      %s96 = scalar_select %p93, %s94, %s95
      %p99 = pneg %p93
      %p100 = scmp.eq.s32.totalorder %s16, 1
      %p101 = por %p99, %p100
      %p102 = scmp.ne.s32.totalorder %s94, %s97
      %p103 = scmp.eq.s32.totalorder %s16, 0
      %p104 = por %p102, %p103
      %p105 = scmp.ne.s32.totalorder %s94, %s97
      %p106 = scmp.eq.s32.totalorder %s21, 1
      %p107 = por %p105, %p106
      %p108 = scmp.ne.s32.totalorder %s97, %s98
      %p109 = scmp.eq.s32.totalorder %s21, 0
      %p110 = por %p108, %p109
      %p111 = scmp.ne.s32.totalorder %s97, %s98
      %p112 = scmp.eq.s32.totalorder %s22, 1
      %p113 = por %p111, %p112
      %p115 = scmp.ne.s32.totalorder %s98, %s114
      %p116 = scmp.eq.s32.totalorder %s22, 0
      %p117 = por %p115, %p116
      %s119 = sadd.s32 %s118, 1
      %p122 = scmp.eq.s32.totalorder %s16, 1
      %p123 = scmp.ne.s32.totalorder %s118, %s120
      %p124 = scmp.eq.s32.totalorder %s16, 0
      %p125 = por %p123, %p124
      %p126 = scmp.ne.s32.totalorder %s118, %s120
      %p127 = scmp.eq.s32.totalorder %s21, 1
      %p128 = por %p126, %p127
      %p129 = scmp.ne.s32.totalorder %s120, %s121
      %p130 = scmp.eq.s32.totalorder %s21, 0
      %p131 = por %p129, %p130
      %p132 = scmp.ne.s32.totalorder %s120, %s121
      %p133 = scmp.eq.s32.totalorder %s22, 1
      %p134 = por %p132, %p133
      %p136 = scmp.ne.s32.totalorder %s121, %s135
      %p137 = scmp.eq.s32.totalorder %s22, 0
      %p138 = por %p136, %p137
      %s140 = sadd.s32 %s139, 1
      %p143 = scmp.eq.s32.totalorder %s16, 1
      %p144 = scmp.ne.s32.totalorder %s139, %s141
      %p145 = scmp.eq.s32.totalorder %s16, 0
      %p146 = por %p144, %p145
      %p147 = scmp.ne.s32.totalorder %s139, %s141
      %p148 = scmp.eq.s32.totalorder %s21, 1
      %p149 = por %p147, %p148
      %p150 = scmp.ne.s32.totalorder %s141, %s142
      %p151 = scmp.eq.s32.totalorder %s21, 0
      %p152 = por %p150, %p151
      %p153 = scmp.ne.s32.totalorder %s141, %s142
      %p154 = scmp.eq.s32.totalorder %s22, 1
      %p155 = por %p153, %p154
      %p157 = scmp.ne.s32.totalorder %s142, %s156
      %p158 = scmp.eq.s32.totalorder %s22, 0
      %p159 = por %p157, %p158
      %s161 = sadd.s32 %s160, 1
      %p164 = scmp.eq.s32.totalorder %s16, 1
      %p165 = scmp.ne.s32.totalorder %s160, %s162
      %p166 = scmp.eq.s32.totalorder %s16, 0
      %p167 = por %p165, %p166
      %p168 = scmp.ne.s32.totalorder %s160, %s162
      %p169 = scmp.eq.s32.totalorder %s21, 1
      %p170 = por %p168, %p169
      %p171 = scmp.ne.s32.totalorder %s162, %s163
      %p172 = scmp.eq.s32.totalorder %s21, 0
      %p173 = por %p171, %p172
      %p174 = scmp.ne.s32.totalorder %s162, %s163
      %p175 = scmp.eq.s32.totalorder %s22, 1
      %p176 = por %p174, %p175
      %p178 = scmp.ne.s32.totalorder %s163, %s177
      %p179 = scmp.eq.s32.totalorder %s22, 0
      %p180 = por %p178, %p179
      %s181 = ssub.s32 %s23, %s35
      %s182 = ssub.s32 %s24, %s31
      %s183 = sor.u32 %s181, %s182
      %p184 = scmp.eq.s32.totalorder %s183, 0
      %s186 = sadd.s32 %s185, 1
      %s187 = scalar_select %p184, %s185, %s186
      %p190 = pneg %p184
      %p191 = scmp.eq.s32.totalorder %s16, 1
      %p192 = por %p190, %p191
      %p193 = scmp.ne.s32.totalorder %s185, %s188
      %p194 = scmp.eq.s32.totalorder %s16, 0
      %p195 = por %p193, %p194
      %p196 = scmp.ne.s32.totalorder %s185, %s188
      %p197 = scmp.eq.s32.totalorder %s21, 1
      %p198 = por %p196, %p197
      %p199 = scmp.ne.s32.totalorder %s188, %s189
      %p200 = scmp.eq.s32.totalorder %s21, 0
      %p201 = por %p199, %p200
      %p202 = scmp.ne.s32.totalorder %s188, %s189
      %p203 = scmp.eq.s32.totalorder %s22, 1
      %p204 = por %p202, %p203
      %p206 = scmp.ne.s32.totalorder %s189, %s205
      %p207 = scmp.eq.s32.totalorder %s22, 0
      %p208 = por %p206, %p207
      %p209 = scmp.le.s32.totalorder 1, %s16
      %p210 = scmp.lt.s32.totalorder %s16, 3
      %p211 = pnand %p209, %p210
      %p212 = pneg %p211
      // Predicated region
      $region9: #{tpu_custom_call.1} parent=5 // pred_check
        _
      $region10: #{tpu_custom_call.1} parent=5 // pred_check_branch
        %214 = sbr.rel (%p211) target = $region12
      $region11: #{tpu_custom_call.1} parent=5 // pred_region
        %s215 = ssub.s32 %s16, 1
        // Predicated region
        $region13: #{tpu_custom_call.1} parent=11 // pred_check
          %p216 = pneg %p131
        $region14: #{tpu_custom_call.1} parent=11 // pred_check_branch
          %218 = sbr.rel (%p216) target = $region16
        $region15: #{tpu_custom_call.1} parent=11 // pred_region
          _
        $region16: #{tpu_custom_call.1} parent=11 // pred_fallthru
          _
        // Predicated region
        $region17: #{tpu_custom_call.1} parent=11 // pred_check
          %p219 = pneg %p152
        $region18: #{tpu_custom_call.1} parent=11 // pred_check_branch
          %221 = sbr.rel (%p219) target = $region20
        $region19: #{tpu_custom_call.1} parent=11 // pred_region
          %s223 = ssub.s32 1024, 1024
          %224 = vsyncadd [#allocation3], %s223
          %s225 = sshll.u32 [#allocation2], 4
          %s226 = int_to_ptr.vmem [resolvable:$true] %s225
          %231 = dma.hbm_to_vmem [thread:$0]  %s4, 1024, %s226, [#allocation3], 64, 64, 4
        $region20: #{tpu_custom_call.1} parent=11 // pred_fallthru
          _
        // Predicated region
        $region21: #{tpu_custom_call.1} parent=11 // pred_check
          %p232 = pneg %p173
        $region22: #{tpu_custom_call.1} parent=11 // pred_check_branch
          %234 = sbr.rel (%p232) target = $region24
        $region23: #{tpu_custom_call.1} parent=11 // pred_region
          _
        $region24: #{tpu_custom_call.1} parent=11 // pred_fallthru
          _
      $region12: #{tpu_custom_call.1} parent=5 // pred_fallthru
        _
      %p235 = scmp.lt.s32.totalorder %s16, 2
      // Predicated region
      $region25: #{tpu_custom_call.1} parent=5 // pred_check
        %p236 = pneg %p235
      $region26: #{tpu_custom_call.1} parent=5 // pred_check_branch
        %238 = sbr.rel (%p236) target = $region28
      $region27: #{tpu_custom_call.1} parent=5 // pred_region
        // Predicated region
        $region29: #{tpu_custom_call.1} parent=27 // pred_check
          %p239 = pneg %p50
        $region30: #{tpu_custom_call.1} parent=27 // pred_check_branch
          %241 = sbr.rel (%p239) target = $region32
        $region31: #{tpu_custom_call.1} parent=27 // pred_region
          %p242 = scmp.lt.s32.totalorder %s23, 1
          %s243 = scalar_select %p242, %s23, 1
          %p244 = scmp.lt.s32.totalorder %s24, 0
          %s245 = scalar_select %p244, %s24, 0
          %s246 = sadd.s32 %s245, %s243
          %s247 = smul.addr %s246, 4
          %s248 = scalar_lea.vmem %s0, %s247
        $region32: #{tpu_custom_call.1} parent=27 // pred_fallthru
          _
        // Predicated region
        $region33: #{tpu_custom_call.1} parent=27 // pred_check
          %p249 = pneg %p78
        $region34: #{tpu_custom_call.1} parent=27 // pred_check_branch
          %251 = sbr.rel (%p249) target = $region36
        $region35: #{tpu_custom_call.1} parent=27 // pred_region
          %p252 = scmp.lt.s32.totalorder %s23, 1
          %s253 = scalar_select %p252, %s23, 1
          %p254 = scmp.lt.s32.totalorder %s24, 0
          %s255 = scalar_select %p254, %s24, 0
          %s256 = sadd.s32 %s255, %s253
          %s257 = smul.addr %s256, 2
          %s258 = scalar_lea.vmem %s1, %s257
        $region36: #{tpu_custom_call.1} parent=27 // pred_fallthru
          _
        // Predicated region
        $region37: #{tpu_custom_call.1} parent=27 // pred_check
          %p259 = pneg %p104
        $region38: #{tpu_custom_call.1} parent=27 // pred_check_branch
          %261 = sbr.rel (%p259) target = $region40
        $region39: #{tpu_custom_call.1} parent=27 // pred_region
          %p262 = scmp.lt.s32.totalorder %s23, 1
          %s263 = scalar_select %p262, %s23, 1
          %s264 = smul.addr %s263, 4
          %s265 = scalar_lea.vmem %s2, %s264
        $region40: #{tpu_custom_call.1} parent=27 // pred_fallthru
          _
      $region28: #{tpu_custom_call.1} parent=5 // pred_fallthru
        _
      %p266 = scmp.le.s32.totalorder 1, %s16
      %p267 = scmp.lt.s32.totalorder %s16, 3
      %p268 = pnand %p266, %p267
      %p269 = pneg %p268
      // Predicated region
      $region41: #{tpu_custom_call.1} parent=5 // pred_check
        _
      $region42: #{tpu_custom_call.1} parent=5 // pred_check_branch
        %271 = sbr.rel (%p268) target = $region44
      $region43: #{tpu_custom_call.1} parent=5 // pred_region
        %s272 = ssub.s32 %s16, 1
        // Predicated region
        $region45: #{tpu_custom_call.1} parent=43 // pred_check
          %p273 = pneg %p152
        $region46: #{tpu_custom_call.1} parent=43 // pred_check_branch
          %275 = sbr.rel (%p273) target = $region48
        $region47: #{tpu_custom_call.1} parent=43 // pred_region
          %276 = dma.done [#allocation3], 1024
        $region48: #{tpu_custom_call.1} parent=43 // pred_fallthru
          _
        %p277 = scmp.lt.s32.totalorder %s25, 1
        %s278 = scalar_select %p277, %s25, 1
        %p279 = scmp.lt.s32.totalorder %s26, 0
        %s280 = scalar_select %p279, %s26, 0
        %s281 = sadd.s32 %s280, %s278
        %s282 = smul.addr %s281, 4
        %s283 = scalar_lea.vmem %s0, %s282
        %p284 = pneg %p56
        %p285 = pneg %p53
        %p286 = scmp.lt.s32.totalorder %s25, 1
        %s287 = scalar_select %p286, %s25, 1
        %p288 = scmp.lt.s32.totalorder %s26, 0
        %s289 = scalar_select %p288, %s26, 0
        %s290 = sadd.s32 %s289, %s287
        %s291 = smul.addr %s290, 2
        %s292 = scalar_lea.vmem %s1, %s291
        %p293 = pneg %p84
        %p294 = pneg %p81
        %p295 = scmp.lt.s32.totalorder %s25, 1
        %s296 = scalar_select %p295, %s25, 1
        %s297 = smul.addr %s296, 4
        %s298 = scalar_lea.vmem %s2, %s297
        %p299 = pneg %p110
        %p300 = pneg %p107
        %p301 = pneg %p131
        %p302 = pneg %p128
        %p303 = pneg %p152
        %p304 = pneg %p149
        %p305 = pneg %p173
        %p306 = pneg %p170
        %p307 = pneg %p201
        %p308 = pneg %p198
        %s309 = sand.u32 %s188, 1
        %s310 = scalar_lea.sflag [#allocation4], %s309
        %s311 = sand.u32 %s188, 1
        %s312 = smul.addr %s311, 4
        %s313 = scalar_lea.vmem [#allocation5], %s312
        %p314 = scmp.lt.s32.totalorder %s25, 1
        %s315 = scalar_select %p314, %s25, 1
        %p316 = scmp.lt.s32.totalorder %s26, 0
        %s317 = scalar_select %p316, %s26, 0
        %s318 = sadd.s32 %s317, %s315
        %s319 = smul.addr %s318, 4
        %s320 = scalar_lea.vmem %s0, %s319
        %p321 = scmp.lt.s32.totalorder %s25, 1
        %s322 = scalar_select %p321, %s25, 1
        %p323 = scmp.lt.s32.totalorder %s26, 0
        %s324 = scalar_select %p323, %s26, 0
        %s325 = sadd.s32 %s324, %s322
        %s326 = smul.addr %s325, 2
        %s327 = scalar_lea.vmem %s1, %s326
        %p328 = scmp.lt.s32.totalorder %s25, 1
        %s329 = scalar_select %p328, %s25, 1
        %s330 = smul.addr %s329, 4
        %s331 = scalar_lea.vmem %s2, %s330
        %v335 = vld [vmem:[%s331] sm:$0x7]
        %v336 = vld [vmem:[%s320] sm:$0xf]
        %v337 = vunpack.c.l.bf16 %v336
        %v338 = vld [vmem:[%s327] sm:$0x3]
        %vm339 = vnez %v338
        %340 = vadd.xlane.f32.xlu0 %v337
        %v341 = vpop.xlane.xlu0 %340
        %v342 = vmul.f32 %v337, %v337
        %343 = vadd.xlane.f32.xlu0 %v342
        %v344 = vpop.xlane.xlu0 %343
        %v345 = vmul.f32 %v341, 0.0078125
        %v346 = vmul.f32 %v344, 0.0078125
        %v347 = vmul.f32 %v345, %v345
        %v348 = vsub.f32 %v346, %v347
        %v349 = vmax.f32 %v348, 0.0
        %v350 = vadd.f32 %v349, 1e-05
        %v351 = vrsqrt.pop %v350
        %v352 = vld [vmem:[%s3] sm:$0x3]
        %v353 = vsel %vm339, 16843009, 0
        %v354 = vunpack.c.0.s8 %v353
        %vm355 = vcmp.ne.s32.totalorder %v354, 0
        %v356 = vsel %vm355, 1, 0
        %357 = vset.pattern.permute.xlu0 0
        %358 = vperm.xlu0 %357, %v356
        %v359 = vpop.permute.xlu0 %358
        %vm360 = vcmp.eq.s32.totalorder %v359, 1
        %v361 = vlaneseq
        %v362 = vshrl.u32 %v361, 7
        %v363 = vsub.s32 0, %v362
        %v364 = vrot.slane %v335, %v363
        %v365 = vlaneseq
        %v366 = vshrl.u32 %v365, 7
        %v367 = vsub.s32 0, %v366
        %v368 = vrot.slane %v352, %v367
        %v369 = vsel %vm360, %v364, %v368
        %v370 = vlaneseq
        %v371 = vshrl.u32 %v370, 7
        %v372 = vsub.s32 1, %v371
        %v373 = vrot.slane %v335, %v372
        %v374 = vsel %vm360, %v373, 0.0
        %v375 = vmul.f32 %v351, %v369
        %v376 = vmul.f32 %v345, %v375
        %v377 = vsub.f32 %v374, %v376
        %v378 = vmul.f32 %v337, %v375
        %v379 = vadd.f32 %v378, %v377
        %v380 = vpack.c.bf16 %v379, %v379
        %v381 = vld [vmem:[#allocation2] sm:$0xf]
        %v382 = vld [vmem:[#allocation2 + $0x4] sm:$0xf]
        %v383 = vld [vmem:[#allocation2 + $0x8] sm:$0xf]
        %v384 = vld [vmem:[#allocation2 + $0xc] sm:$0xf]
        %v385 = vld [vmem:[#allocation2 + $0x10] sm:$0xf]
        %v386 = vld [vmem:[#allocation2 + $0x14] sm:$0xf]
        %v387 = vld [vmem:[#allocation2 + $0x18] sm:$0xf]
        %v388 = vld [vmem:[#allocation2 + $0x1c] sm:$0xf]
        %v389 = vld [vmem:[#allocation2 + $0x20] sm:$0xf]
        %v390 = vld [vmem:[#allocation2 + $0x24] sm:$0xf]
        %v391 = vld [vmem:[#allocation2 + $0x28] sm:$0xf]
        %v392 = vld [vmem:[#allocation2 + $0x2c] sm:$0xf]
        %v393 = vld [vmem:[#allocation2 + $0x30] sm:$0xf]
        %v394 = vld [vmem:[#allocation2 + $0x34] sm:$0xf]
        %v395 = vld [vmem:[#allocation2 + $0x38] sm:$0xf]
        %v396 = vld [vmem:[#allocation2 + $0x3c] sm:$0xf]
        %v397 = vld [vmem:[%s5] sm:$0x1]
        %v399 = vlaneseq
        %v400 = vshrl.u32 %v399, 7
        %v401 = vsub.s32 0, %v400
        %v402 = vrot.slane %v397, %v401
        %v420 = vunpack.c.l.b16 %v381
        %v421 = vunpack.c.l.b16 %v382
        %v422 = vunpack.c.l.b16 %v383
        %v423 = vunpack.c.l.b16 %v384
        %v424 = vunpack.c.l.b16 %v385
        %v425 = vunpack.c.l.b16 %v386
        %v426 = vunpack.c.l.b16 %v387
        %v427 = vunpack.c.l.b16 %v388
        %v428 = vunpack.c.l.b16 %v389
        %v429 = vunpack.c.l.b16 %v390
        %v430 = vunpack.c.l.b16 %v391
        %v431 = vunpack.c.l.b16 %v392
        %v432 = vunpack.c.l.b16 %v393
        %v433 = vunpack.c.l.b16 %v394
        %v434 = vunpack.c.l.b16 %v395
        %v435 = vunpack.c.l.b16 %v396
        %v436 = vpack.c.b16 %v421, %v420
        %v437 = vpack.c.b16 %v423, %v422
        %v438 = vpack.c.b16 %v425, %v424
        %v439 = vpack.c.b16 %v427, %v426
        %v440 = vpack.c.b16 %v429, %v428
        %v441 = vpack.c.b16 %v431, %v430
        %v442 = vpack.c.b16 %v433, %v432
        %v443 = vpack.c.b16 %v435, %v434
        %452 = vmatprep.subr.bf16.mxu0 0
        %453 = vmatpush1.bf16.msra.mxu0 %v436
        %454 = vmatprep.subr.bf16.mxu0 0
        %455 = vmatpush1.bf16.msra.mxu0 %v437
        %456 = vmatprep.subr.bf16.mxu0 0
        %457 = vmatpush1.bf16.msra.mxu0 %v438
        %458 = vmatprep.subr.bf16.mxu0 0
        %459 = vmatpush1.bf16.msra.mxu0 %v439
        %460 = vmatprep.subr.bf16.mxu0 0
        %461 = vmatpush1.bf16.msra.mxu0 %v440
        %462 = vmatprep.subr.bf16.mxu0 0
        %463 = vmatpush1.bf16.msra.mxu0 %v441
        %464 = vmatprep.subr.bf16.mxu0 0
        %465 = vmatpush1.bf16.msra.mxu0 %v442
        %466 = vmatprep.subr.bf16.mxu0 0
        %467 = vmatpush1.bf16.msra.mxu0 %v443
        %468 = vmatprep.subr.bf16.mxu0 0
        %469 = vmatpush1.bf16.msra.mxu0 0
        %470 = vmatprep.subr.bf16.mxu0 0
        %471 = vmatpush1.bf16.msra.mxu0 0
        %472 = vmatprep.subr.bf16.mxu0 0
        %473 = vmatpush1.bf16.msra.mxu0 0
        %474 = vmatprep.subr.bf16.mxu0 0
        %475 = vmatpush1.bf16.msra.mxu0 0
        %476 = vmatprep.subr.bf16.mxu0 0
        %477 = vmatpush1.bf16.msra.mxu0 0
        %478 = vmatprep.subr.bf16.mxu0 0
        %479 = vmatpush1.bf16.msra.mxu0 0
        %480 = vmatprep.subr.bf16.mxu0 0
        %481 = vmatpush1.bf16.msra.mxu0 0
        %482 = vmatprep.subr.bf16.mxu0 0
        %483 = vmatpush1.bf16.msra.mxu0 0
        %484 = vmatprep.mubr.bf16.mxu0 0
        %485 = vmatmul.mubr.bf16.gmra.mrb[0].mxu0 %v380
        %v486 = vpop.f32.mrb[0].mxu0
        %v487 = vadd.f32 %v402, %v486
        %v488 = vpop.f32.mrb[0].mxu0
        %v489 = vpop.f32.mrb[0].mxu0
        %v490 = vpop.f32.mrb[0].mxu0
        %491 = vdwg.mxu0
        %v492 = vlaneseq
        %v493 = vshrl.u32 %v492, 7
        %v494 = vsub.s32 2, %v493
        %v495 = vrot.slane %v335, %v494
        %v496 = vlaneseq
        %v497 = vshrl.u32 %v496, 7
        %v498 = vsub.s32 1, %v497
        %v499 = vrot.slane %v352, %v498
        %v500 = vsel %vm360, %v495, %v499
        %v501 = vmul.f32 %v487, %v500
        %v502 = vpack.c.bf16 %v501, %v501
        %503 = vst [vmem:[%s313] sm:$0xf] %v502
        %s504 = sand.u32 %s188, 1
        %s505 = scalar_lea.sflag [#allocation4], %s504
        %s506 = sand.u32 %s188, 1
        %s507 = smul.addr %s506, 4
        %s508 = scalar_lea.vmem [#allocation5], %s507
        // Predicated region
        $region49: #{tpu_custom_call.1} parent=43 // pred_check
          %p509 = pneg %p198
        $region50: #{tpu_custom_call.1} parent=43 // pred_check_branch
          %511 = sbr.rel (%p509) target = $region52
        $region51: #{tpu_custom_call.1} parent=43 // pred_region
          %s513 = ssub.s32 64, 64
          %514 = vsyncadd %s505, %s513
          %s515 = sadd.s32 %s26, %s25
          %s516 = smul.addr %s515, 64
          %s517 = scalar_lea.hbm %s6, %s516
          %s519 = sshll.u32 %s508, 4
          %s520 = int_to_ptr.vmem [resolvable:$true] %s519
          %522 = dma.vmem_to_hbm [thread:$0]  %s520, 64, %s517, %s505
        $region52: #{tpu_custom_call.1} parent=43 // pred_fallthru
          _
      $region44: #{tpu_custom_call.1} parent=5 // pred_fallthru
        _
      %p523 = scmp.le.s32.totalorder 2, %s16
      // Predicated region
      $region53: #{tpu_custom_call.1} parent=5 // pred_check
        %p524 = pneg %p523
      $region54: #{tpu_custom_call.1} parent=5 // pred_check_branch
        %526 = sbr.rel (%p524) target = $region56
      $region55: #{tpu_custom_call.1} parent=5 // pred_region
        %s527 = ssub.s32 %s16, 2
        // Predicated region
        $region57: #{tpu_custom_call.1} parent=55 // pred_check
          %p528 = pneg %p204
        $region58: #{tpu_custom_call.1} parent=55 // pred_check_branch
          %530 = sbr.rel (%p528) target = $region60
        $region59: #{tpu_custom_call.1} parent=55 // pred_region
          %s531 = sand.u32 %s189, 1
          %s532 = scalar_lea.sflag [#allocation4], %s531
          %s533 = sand.u32 %s189, 1
          %s534 = smul.addr %s533, 4
          %s535 = scalar_lea.vmem [#allocation5], %s534
          %536 = dma.done %s532, 64
        $region60: #{tpu_custom_call.1} parent=55 // pred_fallthru
          _
      $region56: #{tpu_custom_call.1} parent=5 // pred_fallthru
        _
    $region6: #{tpu_custom_call.1} parent=1 // loop_footer
      %s20 = sadd.s32 1, %s16
    $region7: #{tpu_custom_call.1} parent=1 // loop_footer_branch
      %15 = sbr.rel target = $region3
    $region8: #{tpu_custom_call.1} parent=1 // loop_exit
      _
    %537 = vsyncpa [#allocation3], 1
    %s538 = scalar_lea.sflag [#allocation3], 1
    %539 = vsyncpa %s538, 1
    %540 = vsyncpa [#allocation4], 1
    %s541 = scalar_lea.sflag [#allocation4], 1
    %542 = vsyncpa %s541, 1

</llo_original>
